<compile_context>
chip_gen: v7x
topology: tpu7x:2x2x1
jax: 0.10.0
libtpu: 0.0.40
codegen_flags: <defaults>
</compile_context>

<pallas_src>
import math

import jax
import jax.numpy as jnp
from jax.experimental import pallas as pl
from jax.experimental.pallas import tpu as pltpu


def _build_pe_table(d_model: int, max_len: int = 5000,
                    dtype=jnp.float32) -> jnp.ndarray:
    """(max_len, d_model) sinusoidal table, same math as the PyTorch buffer."""
    assert d_model % 2 == 0, "d_model must be even (matches the PyTorch reference)"
    position = jnp.arange(0, max_len, dtype=jnp.float32)[:, None]            # (max_len, 1)
    div_term = jnp.exp(
        jnp.arange(0, d_model, 2, dtype=jnp.float32) * (-math.log(10000.0) / d_model)
    )                                                                          # (d_model/2,)
    pe = jnp.zeros((max_len, d_model), dtype=jnp.float32)
    pe = pe.at[:, 0::2].set(jnp.sin(position * div_term))
    pe = pe.at[:, 1::2].set(jnp.cos(position * div_term))
    return pe.astype(dtype)


def _pe_add_kernel(x_ref, pe_ref, o_ref):
    # x_ref / o_ref: (ts, B*D), lane-dense.   pe_ref: (ts, D).
    d = pe_ref.shape[-1]
    b = x_ref.shape[-1] // d
    pe = pe_ref[...]
    if b > 1:
        # The flat layout of (B, D) is B contiguous chunks of D, so a lane-dim
        # concat of B copies of the pe row reproduces the batch broadcast.
        # Lane concat is cheap (non-VALU slot) and hidden under the DMA.
        pe = jnp.concatenate([pe] * b, axis=-1)
    o_ref[...] = x_ref[...] + pe


def _round_up(n: int, m: int) -> int:
    return ((n + m - 1) // m) * m


def _sublane_multiple(dtype) -> int:
    """Sublane granule per dtype: 8 for 4-byte, 16 for 2-byte, 32 for 1-byte."""
    itemsize = jnp.dtype(dtype).itemsize
    if itemsize >= 4:
        return 8
    if itemsize == 2:
        return 16
    return 32


def _vmem_capacity_bytes() -> int:
    """Per-core VMEM capacity; conservative 64 MiB (v7x) if the query fails."""
    try:
        cap = int(getattr(pltpu.get_tpu_info(), "vmem_capacity_bytes", 0))
        if cap > 0:
            return cap
    except Exception:
        pass
    return 64 * 1024 * 1024


def _choose_seq_tile(S: int, B: int, D: int, dtype, vmem_budget_bytes: int) -> int:
    """Largest seq tile (multiple of the dtype sublane granule) whose
    double-buffered x/out/pe blocks fit the VMEM budget.  Accounts for
    (sublane, lane) tile padding and prefers an even step count >= 2 so both
    v7x TensorCores get work on the 'parallel' axis."""
    itemsize = jnp.dtype(dtype).itemsize
    mult = _sublane_multiple(dtype)
    bd_pad = _round_up(B * D, 128)      # x / out blocks: lane padding to 128
    d_pad = _round_up(D, 128)           # pe block: lane padding to 128
    # Double buffering: 2x x-in block + 2x out block + 2x pe block per seq row.
    per_row = (2 * bd_pad + 2 * bd_pad + 2 * d_pad) * itemsize
    s_ceil = _round_up(S, mult)

    ts = max(mult, (vmem_budget_bytes // max(per_row, 1)) // mult * mult)
    ts = min(ts, s_ceil)

    steps = pl.cdiv(s_ceil, ts)
    # Keep both v7x TensorCores busy when the sequence is long enough.
    if steps == 1 and s_ceil >= 2 * mult:
        ts = _round_up(pl.cdiv(s_ceil, 2), mult)
        steps = pl.cdiv(s_ceil, ts)
    if steps > 1 and steps % 2 == 1:
        ts_even = _round_up(pl.cdiv(s_ceil, steps + 1), mult)
        if ts_even >= mult:
            ts = ts_even
    return ts


def positional_encoding_forward(x: jnp.ndarray, pe_table: jnp.ndarray) -> jnp.ndarray:
    """x: (S, B, D).  Returns x + pe_table[:S] broadcast over batch."""
    S, B, D = x.shape
    max_len, d_model = pe_table.shape
    assert d_model == D and S <= max_len

    # One-time cast in the wrapper: no per-block cast on the VPU, and half the
    # pe DMA bytes when activations are bf16.
    pe = pe_table.astype(x.dtype)
    # Lane-dense view: (S, B, D) -> (S, B*D); contiguous, effectively free.
    x2 = x.reshape(S, B * D)

    capacity = _vmem_capacity_bytes()
    vmem_budget = (capacity * 3) // 8     # 128 MiB -> 48 MiB, 64 MiB -> 24 MiB
    vmem_limit = (capacity * 3) // 4      # 128 MiB -> 96 MiB, 64 MiB -> 48 MiB

    ts = _choose_seq_tile(S, B, D, x.dtype, vmem_budget)
    grid = (pl.cdiv(S, ts),)

    out2 = pl.pallas_call(
        _pe_add_kernel,
        out_shape=jax.ShapeDtypeStruct((S, B * D), x.dtype),
        grid_spec=pltpu.PrefetchScalarGridSpec(
            num_scalar_prefetch=0,
            grid=grid,
            in_specs=[
                pl.BlockSpec((ts, B * D), lambda i: (i, 0)),
                # Window straight into the full (max_len, D) table: no wrapper
                # slice / extra HBM pass for the buffer.
                pl.BlockSpec((ts, D), lambda i: (i, 0)),
            ],
            out_specs=pl.BlockSpec((ts, B * D), lambda i: (i, 0)),
        ),
        # Elementwise with identical shape/dtype: let XLA reuse x's buffer
        # (free under jit with donation; at worst a copy eagerly).
        input_output_aliases={0: 0},
        compiler_params=pltpu.CompilerParams(
            dimension_semantics=("parallel",),
            vmem_limit_bytes=int(vmem_limit),
        ),
    )(x2, pe)
    return out2.reshape(S, B, D)


if __name__ == "__main__":
    # Small shapes consistent with the module: seq=8, batch=2, d_model=32.
    S, B, D = 8, 2, 32
    key = jax.random.PRNGKey(0)
    x = jax.random.normal(key, (S, B, D), dtype=jnp.float32)

    pe_table = _build_pe_table(d_model=D, max_len=5000, dtype=jnp.float32)

    # Reference in plain JAX (same math as the PyTorch forward).
    ref = x + pe_table[:S][:, None, :]

    out = positional_encoding_forward(x, pe_table)
    out = jax.block_until_ready(out)

    assert out.shape == (S, B, D)
    assert jnp.allclose(out, ref, atol=1e-6, rtol=1e-6), "mismatch vs reference"

    print("KERNEL_OK")
</pallas_src>

<mosaic_0001>
module attributes {stable_mosaic.version = 11 : i64} {
  func.func @_pe_add_kernel(%arg0: i32, %arg1: memref<8x64xf32, #tpu.memory_space<vmem>>, %arg2: memref<8x32xf32, #tpu.memory_space<vmem>>, %arg3: memref<8x64xf32, #tpu.memory_space<vmem>>) attributes {dimension_semantics = [#tpu.dimension_semantics<parallel>], iteration_bounds = array<i64: 1>, scalar_prefetch = 0 : i64, scratch_operands = 0 : i64, tpu.core_type = #tpu.core_type<tc>, window_params = [{transform_indices = @transform_0, window_bounds = array<i64: 8, 64>}, {transform_indices = @transform_1, window_bounds = array<i64: 8, 32>}, {transform_indices = @transform_2, window_bounds = array<i64: 8, 64>}]} {
    %c0 = arith.constant 0 : index
    %c0_0 = arith.constant 0 : index
    %0 = vector.load %arg2[%c0, %c0_0] : memref<8x32xf32, #tpu.memory_space<vmem>>, vector<8x32xf32>
    %1 = tpu.concatenate %0, %0 in 1 : vector<8x32xf32>, vector<8x32xf32> -> vector<8x64xf32>
    %c0_1 = arith.constant 0 : index
    %c0_2 = arith.constant 0 : index
    %2 = vector.load %arg1[%c0_1, %c0_2] : memref<8x64xf32, #tpu.memory_space<vmem>>, vector<8x64xf32>
    %3 = arith.addf %2, %1 : vector<8x64xf32>
    %c0_3 = arith.constant 0 : index
    %c0_4 = arith.constant 0 : index
    %4 = vector.load %arg3[%c0_3, %c0_4] : memref<8x64xf32, #tpu.memory_space<vmem>>, vector<8x64xf32>
    tpu.vector_store %arg3[%c0_3, %c0_4], %3 {strides = array<i32>} : memref<8x64xf32, #tpu.memory_space<vmem>>, vector<8x64xf32>,
    return
  }
  func.func @transform_0(%arg0: i32) -> (i32, i32) {
    %c0_i32 = arith.constant 0 : i32
    %c0_i32_0 = arith.constant 0 : i32
    return %arg0, %c0_i32 : i32, i32
  }
  func.func @transform_1(%arg0: i32) -> (i32, i32) {
    %c0_i32 = arith.constant 0 : i32
    %c0_i32_0 = arith.constant 0 : i32
    return %arg0, %c0_i32 : i32, i32
  }
  func.func @transform_2(%arg0: i32) -> (i32, i32) {
    %c0_i32 = arith.constant 0 : i32
    %c0_i32_0 = arith.constant 0 : i32
    return %arg0, %c0_i32 : i32, i32
  }
}

</mosaic_0001>

<llo_original>
// kernel: tpu_custom_call.1
$region0: #{tpu_custom_call.1}
  #allocation0 [shape = 'u32[]', space=smem, size = 0x4, offset = 0x4, fixed_abs, tag = 'smem constant byte address 0x4 - core index']
  #allocation1 [shape = 'u32[144,128]{1,0:T(1,128)}', space=vmem, size = 0x12000, scoped, tag = 'internal scratch']
  %s0 = inlined_call_operand.hbm [shape: f32[8,64], index: 0, kind: input, shape index: {}, may-alias: {0,2}]
  %s1 = inlined_call_operand.vmem [shape: f32[5000,32], index: 1, kind: input, shape index: {}]
  %s2 = inlined_call_operand.hbm [shape: f32[8,64], index: 2, kind: output, shape index: {}, may-alias: {0,2}]
  %s3 = sld [smem:[#allocation0]]
  $region22: #{tpu_custom_call.1} parent=0
    _
  %s5 = ssub.s32 1, %s3
  %s6 = scalar_select 0, %s5, %s3
  $region1: #{tpu_custom_call.1} parent=0
    #allocation2 [shape = 'u8[4096]{0}', space=vmem, size = 0x1000, scoped, tag = 'input window, operand 0, single buffered']
    #allocation3 [shape = 's32[1]{0}', space=sflag, size = 0x4, scoped, tag = 'scoped memory for tpu_custom_call.1']
    #allocation4 [shape = 's32[1]{0}', space=sflag, size = 0x4, scoped, tag = 'scoped memory for tpu_custom_call.1']
    #allocation5 [shape = 'u8[4096]{0}', space=vmem, size = 0x1000, scoped, tag = 'output window, operand 0, single buffered']
    %7 = vsyncpa [#allocation3], 0
    %8 = vsyncpa [#allocation4], 0
    // Predicated region
    $region2: #{tpu_custom_call.1} parent=1 // pred_check
      _
    $region3: #{tpu_custom_call.1} parent=1 // pred_check_branch
      %10 = sbr.rel (0) target = $region5
    $region4: #{tpu_custom_call.1} parent=1 // pred_region
      %s12 = ssub.s32 128, 128
      %13 = vsyncadd [#allocation3], %s12
      %s15 = sshll.u32 [#allocation2], 4
      %s16 = int_to_ptr.vmem [resolvable:$true] %s15
      %18 = dma.hbm_to_vmem [thread:$0]  %s0, 128, %s16, [#allocation3]
    $region5: #{tpu_custom_call.1} parent=1 // pred_fallthru
      _
    // Predicated region
    $region6: #{tpu_custom_call.1} parent=1 // pred_check
      _
    $region7: #{tpu_custom_call.1} parent=1 // pred_check_branch
      %20 = sbr.rel (0) target = $region9
    $region8: #{tpu_custom_call.1} parent=1 // pred_region
      _
    $region9: #{tpu_custom_call.1} parent=1 // pred_fallthru
      _
    // Predicated region
    $region10: #{tpu_custom_call.1} parent=1 // pred_check
      _
    $region11: #{tpu_custom_call.1} parent=1 // pred_check_branch
      %22 = sbr.rel (0) target = $region13
    $region12: #{tpu_custom_call.1} parent=1 // pred_region
      %23 = dma.done [#allocation3], 128
    $region13: #{tpu_custom_call.1} parent=1 // pred_fallthru
      _
    %v24 = vld [vmem:[%s1] sm:$0xff]
    %26 = vrot.lane.b32.xlu0 %v24, 32
    %v27 = vpop.permute.xlu0 %26
    %vm29 = vcmask 261120
    %v30 = vsel %vm29, %v24, %v27
    %v31 = vld [vmem:[#allocation2] sm:$0xff]
    %v32 = vadd.f32 %v31, %v30
    %vm33 = vcmask 523264
    %34 = vst.msk [vmem:[#allocation5] sm:$0xff] %vm33, %v32
    // Predicated region
    $region14: #{tpu_custom_call.1} parent=1 // pred_check
      _
    $region15: #{tpu_custom_call.1} parent=1 // pred_check_branch
      %36 = sbr.rel (0) target = $region17
    $region16: #{tpu_custom_call.1} parent=1 // pred_region
      %s38 = ssub.s32 128, 128
      %39 = vsyncadd [#allocation4], %s38
      %s41 = sshll.u32 [#allocation5], 4
      %s42 = int_to_ptr.vmem [resolvable:$true] %s41
      %44 = dma.vmem_to_hbm [thread:$0]  %s42, 128, %s2, [#allocation4]
    $region17: #{tpu_custom_call.1} parent=1 // pred_fallthru
      _
    // Predicated region
    $region18: #{tpu_custom_call.1} parent=1 // pred_check
      _
    $region19: #{tpu_custom_call.1} parent=1 // pred_check_branch
      %46 = sbr.rel (0) target = $region21
    $region20: #{tpu_custom_call.1} parent=1 // pred_region
      %47 = dma.done [#allocation4], 128
    $region21: #{tpu_custom_call.1} parent=1 // pred_fallthru
      _
    %48 = vsyncpa [#allocation3], 1
    %49 = vsyncpa [#allocation4], 1

</llo_original>
